<compile_context>
chip_gen: v7x
topology: tpu7x:2x2x1
jax: 0.10.0
libtpu: 0.0.40
codegen_flags: <defaults>
</compile_context>

<pallas_src>
import jax
import jax.numpy as jnp
from jax.experimental import pallas as pl
from jax.experimental.pallas import tpu as pltpu

C_IN = 64            # channels of each of x, x2
DIM = 2 * C_IN       # 128 channels after concat
OUT_CH = 2           # final conv output channels
BN_EPS = 1e-5


def _round_up(x, m):
    return (x + m - 1) // m * m


def _pick_tile(hw, max_tile):
    """Pick a lane tile (multiple of 256).  Prefer one that divides hw exactly
    so the wrapper never has to materialize a padded copy of x/x2."""
    cap = max(256, min(_round_up(max_tile, 256), _round_up(hw, 256)))
    t = (cap // 256) * 256
    while t >= 256:
        if hw % t == 0:
            return t, hw          # exact divisor -> no padding
        t -= 256
    tile = (cap // 256) * 256
    return tile, _round_up(hw, tile)


def offset_kernel(x_ref, x2_ref, w1a_ref, w1b_ref, b1_ref,
                  w2_ref, b2_ref, w3_ref, b3_ref, o_ref):
    # x_ref/x2_ref: (64, tile_hw)  -- channels on sublanes, pixels on lanes.
    x = x_ref[...].astype(jnp.bfloat16)
    x2 = x2_ref[...].astype(jnp.bfloat16)

    # conv1 (1x1): split along Cin replaces the channel concat.  f32 accumulate.
    h1 = (jnp.dot(w1a_ref[...], x, preferred_element_type=jnp.float32)
          + jnp.dot(w1b_ref[...], x2, preferred_element_type=jnp.float32)
          + b1_ref[...])                       # (128, tile_hw) f32
    h1 = jnp.maximum(h1, 0.0)

    # conv2 (1x1) with eval-mode BatchNorm folded into (w2, b2), then ReLU.
    h2 = jnp.dot(w2_ref[...], h1.astype(jnp.bfloat16),
                 preferred_element_type=jnp.float32) + b2_ref[...]
    h2 = jnp.maximum(h2, 0.0)

    # conv3 (1x1) -> 2 channels.  Output block is lane-dense (2, tile_hw).
    o = jnp.dot(w3_ref[...], h2.astype(jnp.bfloat16),
                preferred_element_type=jnp.float32) + b3_ref[...]
    o_ref[...] = o.astype(o_ref.dtype)


def offset_forward(x, x2, kparams, *, max_tile_hw=4096):
    """x, x2: (B, 64, H, W) float32 NCHW.  Returns (B, 2, H, W) float32 NCHW."""
    B, C, H, W = x.shape
    assert x2.shape == x.shape and C == C_IN

    HW = H * W
    tile, hw_pad = _pick_tile(HW, max_tile_hw)

    xf = x.reshape(B, C, HW)
    x2f = x2.reshape(B, C, HW)
    if hw_pad != HW:
        pad = ((0, 0), (0, 0), (0, hw_pad - HW))
        xf = jnp.pad(xf, pad)
        x2f = jnp.pad(x2f, pad)

    (w1a, w1b, b1, w2, b2, w3, b3) = kparams

    grid = (B, hw_pad // tile)

    def px_map(b, j):       # per-batch, per-spatial-tile blocks
        return (b, 0, j)

    def const_map(b, j):    # weights/biases: same block every step (no re-DMA)
        return (0, 0)

    out = pl.pallas_call(
        offset_kernel,
        out_shape=jax.ShapeDtypeStruct((B, OUT_CH, hw_pad), jnp.float32),
        grid_spec=pltpu.PrefetchScalarGridSpec(
            num_scalar_prefetch=0,
            grid=grid,
            in_specs=[
                pl.BlockSpec((None, C_IN, tile), px_map),    # x   -> (64, tile)
                pl.BlockSpec((None, C_IN, tile), px_map),    # x2  -> (64, tile)
                pl.BlockSpec((DIM, C_IN), const_map),        # w1a (Cout, Cin/2) bf16
                pl.BlockSpec((DIM, C_IN), const_map),        # w1b (Cout, Cin/2) bf16
                pl.BlockSpec((DIM, 1), const_map),           # b1  (Cout, 1) f32
                pl.BlockSpec((DIM, DIM), const_map),         # w2 (BN-folded) bf16
                pl.BlockSpec((DIM, 1), const_map),           # b2 (BN-folded) f32
                pl.BlockSpec((OUT_CH, DIM), const_map),      # w3 bf16
                pl.BlockSpec((OUT_CH, 1), const_map),        # b3 f32
            ],
            out_specs=pl.BlockSpec((None, OUT_CH, tile), px_map),
        ),
        compiler_params=pltpu.CompilerParams(
            dimension_semantics=("parallel", "parallel")),
    )(xf, x2f, w1a, w1b, b1, w2, b2, w3, b3)

    if hw_pad != HW:
        out = out[:, :, :HW]
    return out.reshape(B, OUT_CH, H, W)


def make_params(key):
    """Synthetic parameters in PyTorch orientation: conv weights are (Cout, Cin)."""
    ks = jax.random.split(key, 10)
    W1 = jax.random.normal(ks[0], (DIM, DIM), jnp.float32) * 0.05
    b1 = jax.random.normal(ks[1], (DIM,), jnp.float32) * 0.05
    W2 = jax.random.normal(ks[2], (DIM, DIM), jnp.float32) * 0.05
    b2 = jax.random.normal(ks[3], (DIM,), jnp.float32) * 0.05
    W3 = jax.random.normal(ks[4], (OUT_CH, DIM), jnp.float32) * 0.05
    b3 = jax.random.normal(ks[5], (OUT_CH,), jnp.float32) * 0.05
    gamma = 1.0 + 0.1 * jax.random.normal(ks[6], (DIM,), jnp.float32)
    beta = 0.1 * jax.random.normal(ks[7], (DIM,), jnp.float32)
    running_mean = 0.1 * jax.random.normal(ks[8], (DIM,), jnp.float32)
    running_var = 1.0 + 0.1 * jnp.abs(jax.random.normal(ks[9], (DIM,), jnp.float32))
    return (W1, b1, gamma, beta, running_mean, running_var, W2, b2, W3, b3)


def prepare_kernel_params(raw):
    """Fold eval-mode BN into conv2, split conv1 along Cin, cast weights to bf16."""
    (W1, b1, gamma, beta, mean, var, W2, b2, W3, b3) = raw
    scale = gamma / jnp.sqrt(var + BN_EPS)          # (128,)
    shift = beta - mean * scale                     # (128,)
    # BN(relu(h1)) = relu(h1) * scale + shift feeding conv2 folds exactly:
    W2f = W2 * scale[None, :]                       # scale along Cin
    b2f = W2 @ shift + b2
    W1a, W1b = W1[:, :C_IN], W1[:, C_IN:]           # split replaces concat
    bf16 = jnp.bfloat16
    return (W1a.astype(bf16), W1b.astype(bf16), b1.reshape(DIM, 1),
            W2f.astype(bf16), b2f.reshape(DIM, 1),
            W3.astype(bf16), b3.reshape(OUT_CH, 1))


def reference_forward(x, x2, raw):
    """Pure-JAX f32 reference with the original (unfolded) parameters."""
    (W1, b1, gamma, beta, mean, var, W2, b2, W3, b3) = raw
    B, C, H, W = x.shape
    xx = jnp.concatenate([x, x2], axis=1).reshape(B, DIM, H * W)
    h1 = jnp.maximum(jnp.einsum('oc,bcn->bon', W1, xx) + b1[None, :, None], 0.0)
    s = gamma / jnp.sqrt(var + BN_EPS)
    t = beta - mean * s
    h1 = h1 * s[None, :, None] + t[None, :, None]
    h2 = jnp.maximum(jnp.einsum('oc,bcn->bon', W2, h1) + b2[None, :, None], 0.0)
    o = jnp.einsum('oc,bcn->bon', W3, h2) + b3[None, :, None]
    return o.reshape(B, OUT_CH, H, W)


if __name__ == "__main__":
    key = jax.random.PRNGKey(0)
    kx, kx2, kp = jax.random.split(key, 3)

    B, C, H, W = 2, 64, 16, 16      # x and x2 each have 64 channels -> 128 after cat
    x = jax.random.normal(kx, (B, C, H, W), jnp.float32)
    x2 = jax.random.normal(kx2, (B, C, H, W), jnp.float32)

    raw = make_params(kp)
    kparams = prepare_kernel_params(raw)

    out = offset_forward(x, x2, kparams)
    out = jax.block_until_ready(out)

    ref = reference_forward(x, x2, raw)
    assert out.shape == (B, OUT_CH, H, W)
    # bf16 matmul inputs (f32 accumulation) vs. f32 reference -> relaxed tolerance.
    assert jnp.allclose(out, ref, atol=2e-2, rtol=2e-2)

    print("KERNEL_OK")
</pallas_src>

<mosaic_0001>
module attributes {stable_mosaic.version = 11 : i64} {
  func.func @offset_kernel(%arg0: i32, %arg1: i32, %arg2: memref<1x64x256xf32, #tpu.memory_space<vmem>>, %arg3: memref<1x64x256xf32, #tpu.memory_space<vmem>>, %arg4: memref<128x64xbf16, #tpu.memory_space<vmem>>, %arg5: memref<128x64xbf16, #tpu.memory_space<vmem>>, %arg6: memref<128x1xf32, #tpu.memory_space<vmem>>, %arg7: memref<128x128xbf16, #tpu.memory_space<vmem>>, %arg8: memref<128x1xf32, #tpu.memory_space<vmem>>, %arg9: memref<2x128xbf16, #tpu.memory_space<vmem>>, %arg10: memref<2x1xf32, #tpu.memory_space<vmem>>, %arg11: memref<1x2x256xf32, #tpu.memory_space<vmem>>) attributes {dimension_semantics = [#tpu.dimension_semantics<parallel>, #tpu.dimension_semantics<parallel>], iteration_bounds = array<i64: 2, 1>, scalar_prefetch = 0 : i64, scratch_operands = 0 : i64, tpu.core_type = #tpu.core_type<tc>, window_params = [{transform_indices = @transform_0, window_bounds = array<i64: 1, 64, 256>}, {transform_indices = @transform_1, window_bounds = array<i64: 1, 64, 256>}, {pipeline_mode = #tpu.pipeline_mode<synchronous>, transform_indices = @transform_2, window_bounds = array<i64: 128, 64>}, {pipeline_mode = #tpu.pipeline_mode<synchronous>, transform_indices = @transform_3, window_bounds = array<i64: 128, 64>}, {pipeline_mode = #tpu.pipeline_mode<synchronous>, transform_indices = @transform_4, window_bounds = array<i64: 128, 1>}, {pipeline_mode = #tpu.pipeline_mode<synchronous>, transform_indices = @transform_5, window_bounds = array<i64: 128, 128>}, {pipeline_mode = #tpu.pipeline_mode<synchronous>, transform_indices = @transform_6, window_bounds = array<i64: 128, 1>}, {pipeline_mode = #tpu.pipeline_mode<synchronous>, transform_indices = @transform_7, window_bounds = array<i64: 2, 128>}, {pipeline_mode = #tpu.pipeline_mode<synchronous>, transform_indices = @transform_8, window_bounds = array<i64: 2, 1>}, {transform_indices = @transform_9, window_bounds = array<i64: 1, 2, 256>}]} {
    %c0 = arith.constant 0 : index
    %c0_0 = arith.constant 0 : index
    %c0_1 = arith.constant 0 : index
    %0 = vector.load %arg2[%c0, %c0_0, %c0_1] : memref<1x64x256xf32, #tpu.memory_space<vmem>>, vector<1x64x256xf32>
    %1 = vector.shape_cast %0 : vector<1x64x256xf32> to vector<64x256xf32>
    %2 = arith.truncf %1 : vector<64x256xf32> to vector<64x256xbf16>
    %c0_2 = arith.constant 0 : index
    %c0_3 = arith.constant 0 : index
    %c0_4 = arith.constant 0 : index
    %3 = vector.load %arg3[%c0_2, %c0_3, %c0_4] : memref<1x64x256xf32, #tpu.memory_space<vmem>>, vector<1x64x256xf32>
    %4 = vector.shape_cast %3 : vector<1x64x256xf32> to vector<64x256xf32>
    %5 = arith.truncf %4 : vector<64x256xf32> to vector<64x256xbf16>
    %c0_5 = arith.constant 0 : index
    %c0_6 = arith.constant 0 : index
    %6 = vector.load %arg4[%c0_5, %c0_6] : memref<128x64xbf16, #tpu.memory_space<vmem>>, vector<128x64xbf16>
    %cst = arith.constant dense<0.000000e+00> : vector<128x256xf32>
    %7 = tpu.matmul %6, %2, %cst {dimension_numbers = #tpu.dot_dimension_numbers<[1], [0], [0], [1], [0, 0, 1, 1], [], []>} : vector<128x64xbf16>, vector<64x256xbf16>, vector<128x256xf32> -> vector<128x256xf32>
    %c0_7 = arith.constant 0 : index
    %c0_8 = arith.constant 0 : index
    %8 = vector.load %arg5[%c0_7, %c0_8] : memref<128x64xbf16, #tpu.memory_space<vmem>>, vector<128x64xbf16>
    %cst_9 = arith.constant dense<0.000000e+00> : vector<128x256xf32>
    %9 = tpu.matmul %8, %5, %cst_9 {dimension_numbers = #tpu.dot_dimension_numbers<[1], [0], [0], [1], [0, 0, 1, 1], [], []>} : vector<128x64xbf16>, vector<64x256xbf16>, vector<128x256xf32> -> vector<128x256xf32>
    %10 = arith.addf %7, %9 : vector<128x256xf32>
    %c0_10 = arith.constant 0 : index
    %c0_11 = arith.constant 0 : index
    %11 = vector.load %arg6[%c0_10, %c0_11] : memref<128x1xf32, #tpu.memory_space<vmem>>, vector<128x1xf32>
    %12 = vector.broadcast %11 : vector<128x1xf32> to vector<128x256xf32>
    %13 = arith.addf %10, %12 : vector<128x256xf32>
    %cst_12 = arith.constant 0.000000e+00 : f32
    %14 = vector.broadcast %cst_12 : f32 to vector<128x256xf32>
    %15 = arith.maximumf %13, %14 : vector<128x256xf32>
    %c0_13 = arith.constant 0 : index
    %c0_14 = arith.constant 0 : index
    %16 = vector.load %arg7[%c0_13, %c0_14] : memref<128x128xbf16, #tpu.memory_space<vmem>>, vector<128x128xbf16>
    %17 = arith.truncf %15 : vector<128x256xf32> to vector<128x256xbf16>
    %cst_15 = arith.constant dense<0.000000e+00> : vector<128x256xf32>
    %18 = tpu.matmul %16, %17, %cst_15 {dimension_numbers = #tpu.dot_dimension_numbers<[1], [0], [0], [1], [0, 0, 1, 1], [], []>} : vector<128x128xbf16>, vector<128x256xbf16>, vector<128x256xf32> -> vector<128x256xf32>
    %c0_16 = arith.constant 0 : index
    %c0_17 = arith.constant 0 : index
    %19 = vector.load %arg8[%c0_16, %c0_17] : memref<128x1xf32, #tpu.memory_space<vmem>>, vector<128x1xf32>
    %20 = vector.broadcast %19 : vector<128x1xf32> to vector<128x256xf32>
    %21 = arith.addf %18, %20 : vector<128x256xf32>
    %cst_18 = arith.constant 0.000000e+00 : f32
    %22 = vector.broadcast %cst_18 : f32 to vector<128x256xf32>
    %23 = arith.maximumf %21, %22 : vector<128x256xf32>
    %c0_19 = arith.constant 0 : index
    %c0_20 = arith.constant 0 : index
    %24 = vector.load %arg9[%c0_19, %c0_20] : memref<2x128xbf16, #tpu.memory_space<vmem>>, vector<2x128xbf16>
    %25 = arith.truncf %23 : vector<128x256xf32> to vector<128x256xbf16>
    %cst_21 = arith.constant dense<0.000000e+00> : vector<2x256xf32>
    %26 = tpu.matmul %24, %25, %cst_21 {dimension_numbers = #tpu.dot_dimension_numbers<[1], [0], [0], [1], [0, 0, 1, 1], [], []>} : vector<2x128xbf16>, vector<128x256xbf16>, vector<2x256xf32> -> vector<2x256xf32>
    %c0_22 = arith.constant 0 : index
    %c0_23 = arith.constant 0 : index
    %27 = vector.load %arg10[%c0_22, %c0_23] : memref<2x1xf32, #tpu.memory_space<vmem>>, vector<2x1xf32>
    %28 = vector.broadcast %27 : vector<2x1xf32> to vector<2x256xf32>
    %29 = arith.addf %26, %28 : vector<2x256xf32>
    %c0_24 = arith.constant 0 : index
    %c0_25 = arith.constant 0 : index
    %c0_26 = arith.constant 0 : index
    %30 = vector.load %arg11[%c0_24, %c0_25, %c0_26] : memref<1x2x256xf32, #tpu.memory_space<vmem>>, vector<1x2x256xf32>
    %31 = vector.shape_cast %30 : vector<1x2x256xf32> to vector<2x256xf32>
    %32 = vector.shape_cast %29 : vector<2x256xf32> to vector<1x2x256xf32>
    tpu.vector_store %arg11[%c0_24, %c0_25, %c0_26], %32 {strides = array<i32>} : memref<1x2x256xf32, #tpu.memory_space<vmem>>, vector<1x2x256xf32>,
    return
  }
  func.func @transform_0(%arg0: i32, %arg1: i32) -> (i32, i32, i32) {
    %c0_i32 = arith.constant 0 : i32
    %c0_i32_0 = arith.constant 0 : i32
    return %arg0, %c0_i32, %arg1 : i32, i32, i32
  }
  func.func @transform_1(%arg0: i32, %arg1: i32) -> (i32, i32, i32) {
    %c0_i32 = arith.constant 0 : i32
    %c0_i32_0 = arith.constant 0 : i32
    return %arg0, %c0_i32, %arg1 : i32, i32, i32
  }
  func.func @transform_2(%arg0: i32, %arg1: i32) -> (i32, i32) {
    %c0_i32 = arith.constant 0 : i32
    %c0_i32_0 = arith.constant 0 : i32
    %c0_i32_1 = arith.constant 0 : i32
    return %c0_i32, %c0_i32_0 : i32, i32
  }
  func.func @transform_3(%arg0: i32, %arg1: i32) -> (i32, i32) {
    %c0_i32 = arith.constant 0 : i32
    %c0_i32_0 = arith.constant 0 : i32
    %c0_i32_1 = arith.constant 0 : i32
    return %c0_i32, %c0_i32_0 : i32, i32
  }
  func.func @transform_4(%arg0: i32, %arg1: i32) -> (i32, i32) {
    %c0_i32 = arith.constant 0 : i32
    %c0_i32_0 = arith.constant 0 : i32
    %c0_i32_1 = arith.constant 0 : i32
    return %c0_i32, %c0_i32_0 : i32, i32
  }
  func.func @transform_5(%arg0: i32, %arg1: i32) -> (i32, i32) {
    %c0_i32 = arith.constant 0 : i32
    %c0_i32_0 = arith.constant 0 : i32
    %c0_i32_1 = arith.constant 0 : i32
    return %c0_i32, %c0_i32_0 : i32, i32
  }
  func.func @transform_6(%arg0: i32, %arg1: i32) -> (i32, i32) {
    %c0_i32 = arith.constant 0 : i32
    %c0_i32_0 = arith.constant 0 : i32
    %c0_i32_1 = arith.constant 0 : i32
    return %c0_i32, %c0_i32_0 : i32, i32
  }
  func.func @transform_7(%arg0: i32, %arg1: i32) -> (i32, i32) {
    %c0_i32 = arith.constant 0 : i32
    %c0_i32_0 = arith.constant 0 : i32
    %c0_i32_1 = arith.constant 0 : i32
    return %c0_i32, %c0_i32_0 : i32, i32
  }
  func.func @transform_8(%arg0: i32, %arg1: i32) -> (i32, i32) {
    %c0_i32 = arith.constant 0 : i32
    %c0_i32_0 = arith.constant 0 : i32
    %c0_i32_1 = arith.constant 0 : i32
    return %c0_i32, %c0_i32_0 : i32, i32
  }
  func.func @transform_9(%arg0: i32, %arg1: i32) -> (i32, i32, i32) {
    %c0_i32 = arith.constant 0 : i32
    %c0_i32_0 = arith.constant 0 : i32
    return %arg0, %c0_i32, %arg1 : i32, i32, i32
  }
}

</mosaic_0001>

<llo_original>
// kernel: tpu_custom_call.1
$region0: #{tpu_custom_call.1}
  #allocation0 [shape = 'u32[]', space=smem, size = 0x4, offset = 0x4, fixed_abs, tag = 'smem constant byte address 0x4 - core index']
  #allocation1 [shape = 'u32[144,128]{1,0:T(1,128)}', space=vmem, size = 0x12000, scoped, tag = 'internal scratch']
  %s0 = inlined_call_operand.vmem [shape: f32[2,64,256], index: 0, kind: input, shape index: {}]
  %s1 = inlined_call_operand.hbm [shape: f32[2,64,256], index: 1, kind: input, shape index: {}]
  %s2 = inlined_call_operand.vmem [shape: bf16[128,64], index: 2, kind: input, shape index: {}]
  %s3 = inlined_call_operand.vmem [shape: bf16[128,64], index: 3, kind: input, shape index: {}]
  %s4 = inlined_call_operand.vmem [shape: f32[128,1], index: 4, kind: input, shape index: {}]
  %s5 = inlined_call_operand.vmem [shape: bf16[128,128], index: 5, kind: input, shape index: {}]
  %s6 = inlined_call_operand.vmem [shape: f32[128,1], index: 6, kind: input, shape index: {}]
  %s7 = inlined_call_operand.vmem [shape: bf16[2,128], index: 7, kind: input, shape index: {}]
  %s8 = inlined_call_operand.vmem [shape: f32[2,1], index: 8, kind: input, shape index: {}]
  %s9 = inlined_call_operand.hbm [shape: f32[2,2,256], index: 9, kind: output, shape index: {}]
  %s10 = sld [smem:[#allocation0]]
  $region73: #{tpu_custom_call.1} parent=0
    _
  %s12 = ssub.s32 1, %s10
  %s13 = scalar_select 0, %s12, %s10
  $region1: #{tpu_custom_call.1} parent=0
    #allocation2 [shape = 'u8[131072]{0}', space=vmem, size = 0x20000, scoped, tag = 'input window, operand 1']
    #allocation3 [shape = 's32[2]{0}', space=sflag, size = 0x8, scoped, tag = 'scoped memory for tpu_custom_call.1']
    #allocation4 [shape = 's32[2]{0}', space=sflag, size = 0x8, scoped, tag = 'scoped memory for tpu_custom_call.1']
    #allocation5 [shape = 'u8[4096]{0}', space=vmem, size = 0x1000, scoped, tag = 'output window, operand 0']
    %14 = vsyncpa [#allocation3], 0
    %s15 = scalar_lea.sflag [#allocation3], 1
    %16 = vsyncpa %s15, 0
    %17 = vsyncpa [#allocation4], 0
    %s18 = scalar_lea.sflag [#allocation4], 1
    %19 = vsyncpa %s18, 0
    loop: start=0, step=1, limit=4
    $region2: #{tpu_custom_call.1} parent=1 // loop_pre_header
      _
    $region3: #{tpu_custom_call.1} parent=1 // loop_header
      %s21 = sphi 0, %s25
      %p22 = scmp.ge.s32.totalorder %s21, 4
      %s28 = sphi 0, %s40
      %s29 = sphi 0, %s36
      %s30 = sphi 0, %s28
      %s31 = sphi 0, %s29
      %s32 = sphi 0, %s30
      %s33 = sphi 0, %s31
      %s45 = sphi 0, %s47
      %s48 = sphi 0, %s45
      %s49 = sphi 0, %s48
      %s65 = sphi 0, %s49
      %s73 = sphi 0, %s75
      %s76 = sphi 0, %s73
      %s77 = sphi 0, %s76
      %s93 = sphi 0, %s77
      %s97 = sphi 0, %s97
      %s99 = sphi 0, %s97
      %s100 = sphi 0, %s99
      %s114 = sphi 0, %s100
      %s118 = sphi 0, %s118
      %s120 = sphi 0, %s118
      %s121 = sphi 0, %s120
      %s135 = sphi 0, %s121
      %s139 = sphi 0, %s139
      %s141 = sphi 0, %s139
      %s142 = sphi 0, %s141
      %s156 = sphi 0, %s142
      %s160 = sphi 0, %s160
      %s162 = sphi 0, %s160
      %s163 = sphi 0, %s162
      %s177 = sphi 0, %s163
      %s181 = sphi 0, %s181
      %s183 = sphi 0, %s181
      %s184 = sphi 0, %s183
      %s198 = sphi 0, %s184
      %s202 = sphi 0, %s202
      %s204 = sphi 0, %s202
      %s205 = sphi 0, %s204
      %s219 = sphi 0, %s205
      %s223 = sphi 0, %s223
      %s225 = sphi 0, %s223
      %s226 = sphi 0, %s225
      %s240 = sphi 0, %s226
      %s248 = sphi 0, %s250
      %s251 = sphi 0, %s248
      %s252 = sphi 0, %s251
      %s268 = sphi 0, %s252
    $region4: #{tpu_custom_call.1} parent=1 // loop_header_branch
      %24 = sbr.rel (%p22) target = $region8
    $region5: #{tpu_custom_call.1} parent=1 // loop_body
      %s26 = ssub.s32 %s21, 1
      %s27 = ssub.s32 %s21, 2
      %s34 = sadd.s32 1, %s29
      %p35 = scmp.ge.s32.totalorder %s34, 1
      %s36 = scalar_select %p35, 0, %s34
      %s37 = sadd.s32 1, %s28
      %s38 = scalar_select %p35, %s37, %s28
      %p39 = scmp.ge.s32.totalorder %s38, 2
      %s40 = scalar_select %p39, 0, %s38
      %s41 = ssub.s32 %s28, %s40
      %s42 = ssub.s32 %s29, %s36
      %s43 = sor.u32 %s41, %s42
      %p44 = scmp.eq.s32.totalorder %s43, 0
      %s46 = sadd.s32 %s45, 1
      %s47 = scalar_select %p44, %s45, %s46
      %p50 = pneg %p44
      %p51 = scmp.eq.s32.totalorder %s21, 1
      %p52 = por %p50, %p51
      %p53 = scmp.ne.s32.totalorder %s45, %s48
      %p54 = scmp.eq.s32.totalorder %s21, 0
      %p55 = por %p53, %p54
      %p56 = scmp.ne.s32.totalorder %s45, %s48
      %p57 = scmp.eq.s32.totalorder %s26, 1
      %p58 = por %p56, %p57
      %p59 = scmp.ne.s32.totalorder %s48, %s49
      %p60 = scmp.eq.s32.totalorder %s26, 0
      %p61 = por %p59, %p60
      %p62 = scmp.ne.s32.totalorder %s48, %s49
      %p63 = scmp.eq.s32.totalorder %s27, 1
      %p64 = por %p62, %p63
      %p66 = scmp.ne.s32.totalorder %s49, %s65
      %p67 = scmp.eq.s32.totalorder %s27, 0
      %p68 = por %p66, %p67
      %s69 = ssub.s32 %s28, %s40
      %s70 = ssub.s32 %s29, %s36
      %s71 = sor.u32 %s69, %s70
      %p72 = scmp.eq.s32.totalorder %s71, 0
      %s74 = sadd.s32 %s73, 1
      %s75 = scalar_select %p72, %s73, %s74
      %p78 = pneg %p72
      %p79 = scmp.eq.s32.totalorder %s21, 1
      %p80 = por %p78, %p79
      %p81 = scmp.ne.s32.totalorder %s73, %s76
      %p82 = scmp.eq.s32.totalorder %s21, 0
      %p83 = por %p81, %p82
      %p84 = scmp.ne.s32.totalorder %s73, %s76
      %p85 = scmp.eq.s32.totalorder %s26, 1
      %p86 = por %p84, %p85
      %p87 = scmp.ne.s32.totalorder %s76, %s77
      %p88 = scmp.eq.s32.totalorder %s26, 0
      %p89 = por %p87, %p88
      %p90 = scmp.ne.s32.totalorder %s76, %s77
      %p91 = scmp.eq.s32.totalorder %s27, 1
      %p92 = por %p90, %p91
      %p94 = scmp.ne.s32.totalorder %s77, %s93
      %p95 = scmp.eq.s32.totalorder %s27, 0
      %p96 = por %p94, %p95
      %s98 = sadd.s32 %s97, 1
      %p101 = scmp.eq.s32.totalorder %s21, 1
      %p102 = scmp.ne.s32.totalorder %s97, %s99
      %p103 = scmp.eq.s32.totalorder %s21, 0
      %p104 = por %p102, %p103
      %p105 = scmp.ne.s32.totalorder %s97, %s99
      %p106 = scmp.eq.s32.totalorder %s26, 1
      %p107 = por %p105, %p106
      %p108 = scmp.ne.s32.totalorder %s99, %s100
      %p109 = scmp.eq.s32.totalorder %s26, 0
      %p110 = por %p108, %p109
      %p111 = scmp.ne.s32.totalorder %s99, %s100
      %p112 = scmp.eq.s32.totalorder %s27, 1
      %p113 = por %p111, %p112
      %p115 = scmp.ne.s32.totalorder %s100, %s114
      %p116 = scmp.eq.s32.totalorder %s27, 0
      %p117 = por %p115, %p116
      %s119 = sadd.s32 %s118, 1
      %p122 = scmp.eq.s32.totalorder %s21, 1
      %p123 = scmp.ne.s32.totalorder %s118, %s120
      %p124 = scmp.eq.s32.totalorder %s21, 0
      %p125 = por %p123, %p124
      %p126 = scmp.ne.s32.totalorder %s118, %s120
      %p127 = scmp.eq.s32.totalorder %s26, 1
      %p128 = por %p126, %p127
      %p129 = scmp.ne.s32.totalorder %s120, %s121
      %p130 = scmp.eq.s32.totalorder %s26, 0
      %p131 = por %p129, %p130
      %p132 = scmp.ne.s32.totalorder %s120, %s121
      %p133 = scmp.eq.s32.totalorder %s27, 1
      %p134 = por %p132, %p133
      %p136 = scmp.ne.s32.totalorder %s121, %s135
      %p137 = scmp.eq.s32.totalorder %s27, 0
      %p138 = por %p136, %p137
      %s140 = sadd.s32 %s139, 1
      %p143 = scmp.eq.s32.totalorder %s21, 1
      %p144 = scmp.ne.s32.totalorder %s139, %s141
      %p145 = scmp.eq.s32.totalorder %s21, 0
      %p146 = por %p144, %p145
      %p147 = scmp.ne.s32.totalorder %s139, %s141
      %p148 = scmp.eq.s32.totalorder %s26, 1
      %p149 = por %p147, %p148
      %p150 = scmp.ne.s32.totalorder %s141, %s142
      %p151 = scmp.eq.s32.totalorder %s26, 0
      %p152 = por %p150, %p151
      %p153 = scmp.ne.s32.totalorder %s141, %s142
      %p154 = scmp.eq.s32.totalorder %s27, 1
      %p155 = por %p153, %p154
      %p157 = scmp.ne.s32.totalorder %s142, %s156
      %p158 = scmp.eq.s32.totalorder %s27, 0
      %p159 = por %p157, %p158
      %s161 = sadd.s32 %s160, 1
      %p164 = scmp.eq.s32.totalorder %s21, 1
      %p165 = scmp.ne.s32.totalorder %s160, %s162
      %p166 = scmp.eq.s32.totalorder %s21, 0
      %p167 = por %p165, %p166
      %p168 = scmp.ne.s32.totalorder %s160, %s162
      %p169 = scmp.eq.s32.totalorder %s26, 1
      %p170 = por %p168, %p169
      %p171 = scmp.ne.s32.totalorder %s162, %s163
      %p172 = scmp.eq.s32.totalorder %s26, 0
      %p173 = por %p171, %p172
      %p174 = scmp.ne.s32.totalorder %s162, %s163
      %p175 = scmp.eq.s32.totalorder %s27, 1
      %p176 = por %p174, %p175
      %p178 = scmp.ne.s32.totalorder %s163, %s177
      %p179 = scmp.eq.s32.totalorder %s27, 0
      %p180 = por %p178, %p179
      %s182 = sadd.s32 %s181, 1
      %p185 = scmp.eq.s32.totalorder %s21, 1
      %p186 = scmp.ne.s32.totalorder %s181, %s183
      %p187 = scmp.eq.s32.totalorder %s21, 0
      %p188 = por %p186, %p187
      %p189 = scmp.ne.s32.totalorder %s181, %s183
      %p190 = scmp.eq.s32.totalorder %s26, 1
      %p191 = por %p189, %p190
      %p192 = scmp.ne.s32.totalorder %s183, %s184
      %p193 = scmp.eq.s32.totalorder %s26, 0
      %p194 = por %p192, %p193
      %p195 = scmp.ne.s32.totalorder %s183, %s184
      %p196 = scmp.eq.s32.totalorder %s27, 1
      %p197 = por %p195, %p196
      %p199 = scmp.ne.s32.totalorder %s184, %s198
      %p200 = scmp.eq.s32.totalorder %s27, 0
      %p201 = por %p199, %p200
      %s203 = sadd.s32 %s202, 1
      %p206 = scmp.eq.s32.totalorder %s21, 1
      %p207 = scmp.ne.s32.totalorder %s202, %s204
      %p208 = scmp.eq.s32.totalorder %s21, 0
      %p209 = por %p207, %p208
      %p210 = scmp.ne.s32.totalorder %s202, %s204
      %p211 = scmp.eq.s32.totalorder %s26, 1
      %p212 = por %p210, %p211
      %p213 = scmp.ne.s32.totalorder %s204, %s205
      %p214 = scmp.eq.s32.totalorder %s26, 0
      %p215 = por %p213, %p214
      %p216 = scmp.ne.s32.totalorder %s204, %s205
      %p217 = scmp.eq.s32.totalorder %s27, 1
      %p218 = por %p216, %p217
      %p220 = scmp.ne.s32.totalorder %s205, %s219
      %p221 = scmp.eq.s32.totalorder %s27, 0
      %p222 = por %p220, %p221
      %s224 = sadd.s32 %s223, 1
      %p227 = scmp.eq.s32.totalorder %s21, 1
      %p228 = scmp.ne.s32.totalorder %s223, %s225
      %p229 = scmp.eq.s32.totalorder %s21, 0
      %p230 = por %p228, %p229
      %p231 = scmp.ne.s32.totalorder %s223, %s225
      %p232 = scmp.eq.s32.totalorder %s26, 1
      %p233 = por %p231, %p232
      %p234 = scmp.ne.s32.totalorder %s225, %s226
      %p235 = scmp.eq.s32.totalorder %s26, 0
      %p236 = por %p234, %p235
      %p237 = scmp.ne.s32.totalorder %s225, %s226
      %p238 = scmp.eq.s32.totalorder %s27, 1
      %p239 = por %p237, %p238
      %p241 = scmp.ne.s32.totalorder %s226, %s240
      %p242 = scmp.eq.s32.totalorder %s27, 0
      %p243 = por %p241, %p242
      %s244 = ssub.s32 %s28, %s40
      %s245 = ssub.s32 %s29, %s36
      %s246 = sor.u32 %s244, %s245
      %p247 = scmp.eq.s32.totalorder %s246, 0
      %s249 = sadd.s32 %s248, 1
      %s250 = scalar_select %p247, %s248, %s249
      %p253 = pneg %p247
      %p254 = scmp.eq.s32.totalorder %s21, 1
      %p255 = por %p253, %p254
      %p256 = scmp.ne.s32.totalorder %s248, %s251
      %p257 = scmp.eq.s32.totalorder %s21, 0
      %p258 = por %p256, %p257
      %p259 = scmp.ne.s32.totalorder %s248, %s251
      %p260 = scmp.eq.s32.totalorder %s26, 1
      %p261 = por %p259, %p260
      %p262 = scmp.ne.s32.totalorder %s251, %s252
      %p263 = scmp.eq.s32.totalorder %s26, 0
      %p264 = por %p262, %p263
      %p265 = scmp.ne.s32.totalorder %s251, %s252
      %p266 = scmp.eq.s32.totalorder %s27, 1
      %p267 = por %p265, %p266
      %p269 = scmp.ne.s32.totalorder %s252, %s268
      %p270 = scmp.eq.s32.totalorder %s27, 0
      %p271 = por %p269, %p270
      %p272 = scmp.le.s32.totalorder 1, %s21
      %p273 = scmp.lt.s32.totalorder %s21, 3
      %p274 = pnand %p272, %p273
      %p275 = pneg %p274
      // Predicated region
      $region9: #{tpu_custom_call.1} parent=5 // pred_check
        _
      $region10: #{tpu_custom_call.1} parent=5 // pred_check_branch
        %277 = sbr.rel (%p274) target = $region12
      $region11: #{tpu_custom_call.1} parent=5 // pred_region
        %s278 = ssub.s32 %s21, 1
        // Predicated region
        $region13: #{tpu_custom_call.1} parent=11 // pred_check
          %p279 = pneg %p110
        $region14: #{tpu_custom_call.1} parent=11 // pred_check_branch
          %281 = sbr.rel (%p279) target = $region16
        $region15: #{tpu_custom_call.1} parent=11 // pred_region
          _
        $region16: #{tpu_custom_call.1} parent=11 // pred_fallthru
          _
        // Predicated region
        $region17: #{tpu_custom_call.1} parent=11 // pred_check
          %p282 = pneg %p131
        $region18: #{tpu_custom_call.1} parent=11 // pred_check_branch
          %284 = sbr.rel (%p282) target = $region20
        $region19: #{tpu_custom_call.1} parent=11 // pred_region
          _
        $region20: #{tpu_custom_call.1} parent=11 // pred_fallthru
          _
        // Predicated region
        $region21: #{tpu_custom_call.1} parent=11 // pred_check
          %p285 = pneg %p152
        $region22: #{tpu_custom_call.1} parent=11 // pred_check_branch
          %287 = sbr.rel (%p285) target = $region24
        $region23: #{tpu_custom_call.1} parent=11 // pred_region
          _
        $region24: #{tpu_custom_call.1} parent=11 // pred_fallthru
          _
        // Predicated region
        $region25: #{tpu_custom_call.1} parent=11 // pred_check
          %p288 = pneg %p173
        $region26: #{tpu_custom_call.1} parent=11 // pred_check_branch
          %290 = sbr.rel (%p288) target = $region28
        $region27: #{tpu_custom_call.1} parent=11 // pred_region
          _
        $region28: #{tpu_custom_call.1} parent=11 // pred_fallthru
          _
        // Predicated region
        $region29: #{tpu_custom_call.1} parent=11 // pred_check
          %p291 = pneg %p194
        $region30: #{tpu_custom_call.1} parent=11 // pred_check_branch
          %293 = sbr.rel (%p291) target = $region32
        $region31: #{tpu_custom_call.1} parent=11 // pred_region
          _
        $region32: #{tpu_custom_call.1} parent=11 // pred_fallthru
          _
        // Predicated region
        $region33: #{tpu_custom_call.1} parent=11 // pred_check
          %p294 = pneg %p215
        $region34: #{tpu_custom_call.1} parent=11 // pred_check_branch
          %296 = sbr.rel (%p294) target = $region36
        $region35: #{tpu_custom_call.1} parent=11 // pred_region
          _
        $region36: #{tpu_custom_call.1} parent=11 // pred_fallthru
          _
        // Predicated region
        $region37: #{tpu_custom_call.1} parent=11 // pred_check
          %p297 = pneg %p236
        $region38: #{tpu_custom_call.1} parent=11 // pred_check_branch
          %299 = sbr.rel (%p297) target = $region40
        $region39: #{tpu_custom_call.1} parent=11 // pred_region
          _
        $region40: #{tpu_custom_call.1} parent=11 // pred_fallthru
          _
      $region12: #{tpu_custom_call.1} parent=5 // pred_fallthru
        _
      %p300 = scmp.lt.s32.totalorder %s21, 2
      // Predicated region
      $region41: #{tpu_custom_call.1} parent=5 // pred_check
        %p301 = pneg %p300
      $region42: #{tpu_custom_call.1} parent=5 // pred_check_branch
        %303 = sbr.rel (%p301) target = $region44
      $region43: #{tpu_custom_call.1} parent=5 // pred_region
        // Predicated region
        $region45: #{tpu_custom_call.1} parent=43 // pred_check
          %p304 = pneg %p55
        $region46: #{tpu_custom_call.1} parent=43 // pred_check_branch
          %306 = sbr.rel (%p304) target = $region48
        $region47: #{tpu_custom_call.1} parent=43 // pred_region
          %s307 = smul.u32 2, %s29
          %p308 = scmp.lt.s32.totalorder %s28, 1
          %s309 = scalar_select %p308, %s28, 1
          %p310 = scmp.lt.s32.totalorder %s307, 1
          %s311 = scalar_select %p310, %s307, 1
          %s312 = smul.addr %s309, 16
          %s313 = sadd.s32 %s311, %s312
          %s314 = smul.addr %s313, 8
          %s315 = scalar_lea.vmem %s0, %s314
          %s316 = smul.u32 2, %s29
        $region48: #{tpu_custom_call.1} parent=43 // pred_fallthru
          _
        // Predicated region
        $region49: #{tpu_custom_call.1} parent=43 // pred_check
          %p317 = pneg %p83
        $region50: #{tpu_custom_call.1} parent=43 // pred_check_branch
          %319 = sbr.rel (%p317) target = $region52
        $region51: #{tpu_custom_call.1} parent=43 // pred_region
          %s320 = sand.u32 %s73, 1
          %s321 = scalar_lea.sflag [#allocation3], %s320
          %s322 = sand.u32 %s73, 1
          %s323 = smul.addr %s322, 128
          %s324 = scalar_lea.vmem [#allocation2], %s323
          %s325 = smul.u32 2, %s29
          %s327 = ssub.s32 2048, 2048
          %328 = vsyncadd %s321, %s327
          %s329 = smul.addr %s28, 16
          %s330 = sadd.s32 %s325, %s329
          %s331 = smul.addr %s330, 128
          %s332 = scalar_lea.hbm %s1, %s331
          %s333 = sshll.u32 %s324, 4
          %s334 = int_to_ptr.vmem [resolvable:$true] %s333
          %339 = dma.hbm_to_vmem [thread:$0]  %s332, 2048, %s334, %s321, 256, 256, 16
        $region52: #{tpu_custom_call.1} parent=43 // pred_fallthru
          _
      $region44: #{tpu_custom_call.1} parent=5 // pred_fallthru
        _
      %p340 = scmp.le.s32.totalorder 1, %s21
      %p341 = scmp.lt.s32.totalorder %s21, 3
      %p342 = pnand %p340, %p341
      %p343 = pneg %p342
      // Predicated region
      $region53: #{tpu_custom_call.1} parent=5 // pred_check
        _
      $region54: #{tpu_custom_call.1} parent=5 // pred_check_branch
        %345 = sbr.rel (%p342) target = $region56
      $region55: #{tpu_custom_call.1} parent=5 // pred_region
        %s346 = ssub.s32 %s21, 1
        %s347 = sand.u32 %s76, 1
        %s348 = scalar_lea.sflag [#allocation3], %s347
        %s349 = sand.u32 %s76, 1
        %s350 = smul.addr %s349, 128
        %s351 = scalar_lea.vmem [#allocation2], %s350
        // Predicated region
        $region57: #{tpu_custom_call.1} parent=55 // pred_check
          %p352 = pneg %p89
        $region58: #{tpu_custom_call.1} parent=55 // pred_check_branch
          %354 = sbr.rel (%p352) target = $region60
        $region59: #{tpu_custom_call.1} parent=55 // pred_region
          %355 = dma.done %s348, 2048
        $region60: #{tpu_custom_call.1} parent=55 // pred_fallthru
          _
        %s356 = smul.u32 2, %s31
        %p357 = scmp.lt.s32.totalorder %s30, 1
        %s358 = scalar_select %p357, %s30, 1
        %p359 = scmp.lt.s32.totalorder %s356, 1
        %s360 = scalar_select %p359, %s356, 1
        %s361 = smul.addr %s358, 16
        %s362 = sadd.s32 %s360, %s361
        %s363 = smul.addr %s362, 8
        %s364 = scalar_lea.vmem %s0, %s363
        %p365 = pneg %p61
        %p366 = pneg %p58
        %s367 = sand.u32 %s76, 1
        %s368 = scalar_lea.sflag [#allocation3], %s367
        %s369 = sand.u32 %s76, 1
        %s370 = smul.addr %s369, 128
        %s371 = scalar_lea.vmem [#allocation2], %s370
        %p372 = pneg %p89
        %p373 = pneg %p86
        %p374 = pneg %p110
        %p375 = pneg %p107
        %p376 = pneg %p131
        %p377 = pneg %p128
        %p378 = pneg %p152
        %p379 = pneg %p149
        %p380 = pneg %p173
        %p381 = pneg %p170
        %p382 = pneg %p194
        %p383 = pneg %p191
        %p384 = pneg %p215
        %p385 = pneg %p212
        %p386 = pneg %p236
        %p387 = pneg %p233
        %p388 = pneg %p264
        %p389 = pneg %p261
        %s390 = sand.u32 %s251, 1
        %s391 = scalar_lea.sflag [#allocation4], %s390
        %s392 = sand.u32 %s251, 1
        %s393 = smul.addr %s392, 4
        %s394 = scalar_lea.vmem [#allocation5], %s393
        %s395 = smul.u32 2, %s31
        %p396 = scmp.lt.s32.totalorder %s30, 1
        %s397 = scalar_select %p396, %s30, 1
        %p398 = scmp.lt.s32.totalorder %s395, 1
        %s399 = scalar_select %p398, %s395, 1
        %s400 = smul.addr %s397, 16
        %s401 = sadd.s32 %s399, %s400
        %s402 = smul.addr %s401, 8
        %s403 = scalar_lea.vmem %s0, %s402
        %s404 = smul.u32 2, %s31
        %s405 = smul.u32 2, %s31
        %s406 = smul.u32 2, %s31
        %v408 = vld [vmem:[%s403] sm:$0xff]
        %v409 = vld [vmem:[%s403 + $0x8] sm:$0xff]
        %v410 = vld [vmem:[%s403 + $0x10] sm:$0xff]
        %v411 = vld [vmem:[%s403 + $0x18] sm:$0xff]
        %v412 = vld [vmem:[%s403 + $0x20] sm:$0xff]
        %v413 = vld [vmem:[%s403 + $0x28] sm:$0xff]
        %v414 = vld [vmem:[%s403 + $0x30] sm:$0xff]
        %v415 = vld [vmem:[%s403 + $0x38] sm:$0xff]
        %v416 = vld [vmem:[%s403 + $0x40] sm:$0xff]
        %v417 = vld [vmem:[%s403 + $0x48] sm:$0xff]
        %v418 = vld [vmem:[%s403 + $0x50] sm:$0xff]
        %v419 = vld [vmem:[%s403 + $0x58] sm:$0xff]
        %v420 = vld [vmem:[%s403 + $0x60] sm:$0xff]
        %v421 = vld [vmem:[%s403 + $0x68] sm:$0xff]
        %v422 = vld [vmem:[%s403 + $0x70] sm:$0xff]
        %v423 = vld [vmem:[%s403 + $0x78] sm:$0xff]
        %v424 = vpack.c.bf16 %v410, %v408
        %v425 = vpack.c.bf16 %v411, %v409
        %v426 = vpack.c.bf16 %v414, %v412
        %v427 = vpack.c.bf16 %v415, %v413
        %v428 = vpack.c.bf16 %v418, %v416
        %v429 = vpack.c.bf16 %v419, %v417
        %v430 = vpack.c.bf16 %v422, %v420
        %v431 = vpack.c.bf16 %v423, %v421
        %v432 = vld [vmem:[%s351] sm:$0xff]
        %v433 = vld [vmem:[%s351 + $0x8] sm:$0xff]
        %v434 = vld [vmem:[%s351 + $0x10] sm:$0xff]
        %v435 = vld [vmem:[%s351 + $0x18] sm:$0xff]
        %v436 = vld [vmem:[%s351 + $0x20] sm:$0xff]
        %v437 = vld [vmem:[%s351 + $0x28] sm:$0xff]
        %v438 = vld [vmem:[%s351 + $0x30] sm:$0xff]
        %v439 = vld [vmem:[%s351 + $0x38] sm:$0xff]
        %v440 = vld [vmem:[%s351 + $0x40] sm:$0xff]
        %v441 = vld [vmem:[%s351 + $0x48] sm:$0xff]
        %v442 = vld [vmem:[%s351 + $0x50] sm:$0xff]
        %v443 = vld [vmem:[%s351 + $0x58] sm:$0xff]
        %v444 = vld [vmem:[%s351 + $0x60] sm:$0xff]
        %v445 = vld [vmem:[%s351 + $0x68] sm:$0xff]
        %v446 = vld [vmem:[%s351 + $0x70] sm:$0xff]
        %v447 = vld [vmem:[%s351 + $0x78] sm:$0xff]
        %v448 = vpack.c.bf16 %v434, %v432
        %v449 = vpack.c.bf16 %v435, %v433
        %v450 = vpack.c.bf16 %v438, %v436
        %v451 = vpack.c.bf16 %v439, %v437
        %v452 = vpack.c.bf16 %v442, %v440
        %v453 = vpack.c.bf16 %v443, %v441
        %v454 = vpack.c.bf16 %v446, %v444
        %v455 = vpack.c.bf16 %v447, %v445
        %v456 = vld [vmem:[%s2] sm:$0xf]
        %v457 = vld [vmem:[%s2 + $0x4] sm:$0xf]
        %v458 = vld [vmem:[%s2 + $0x8] sm:$0xf]
        %v459 = vld [vmem:[%s2 + $0xc] sm:$0xf]
        %v460 = vld [vmem:[%s2 + $0x10] sm:$0xf]
        %v461 = vld [vmem:[%s2 + $0x14] sm:$0xf]
        %v462 = vld [vmem:[%s2 + $0x18] sm:$0xf]
        %v463 = vld [vmem:[%s2 + $0x1c] sm:$0xf]
        %v464 = vld [vmem:[%s2 + $0x20] sm:$0xf]
        %v465 = vld [vmem:[%s2 + $0x24] sm:$0xf]
        %v466 = vld [vmem:[%s2 + $0x28] sm:$0xf]
        %v467 = vld [vmem:[%s2 + $0x2c] sm:$0xf]
        %v468 = vld [vmem:[%s2 + $0x30] sm:$0xf]
        %v469 = vld [vmem:[%s2 + $0x34] sm:$0xf]
        %v470 = vld [vmem:[%s2 + $0x38] sm:$0xf]
        %v471 = vld [vmem:[%s2 + $0x3c] sm:$0xf]
        %v472 = vld [vmem:[%s3] sm:$0xf]
        %v473 = vld [vmem:[%s3 + $0x4] sm:$0xf]
        %v474 = vld [vmem:[%s3 + $0x8] sm:$0xf]
        %v475 = vld [vmem:[%s3 + $0xc] sm:$0xf]
        %v476 = vld [vmem:[%s3 + $0x10] sm:$0xf]
        %v477 = vld [vmem:[%s3 + $0x14] sm:$0xf]
        %v478 = vld [vmem:[%s3 + $0x18] sm:$0xf]
        %v479 = vld [vmem:[%s3 + $0x1c] sm:$0xf]
        %v480 = vld [vmem:[%s3 + $0x20] sm:$0xf]
        %v481 = vld [vmem:[%s3 + $0x24] sm:$0xf]
        %v482 = vld [vmem:[%s3 + $0x28] sm:$0xf]
        %v483 = vld [vmem:[%s3 + $0x2c] sm:$0xf]
        %v484 = vld [vmem:[%s3 + $0x30] sm:$0xf]
        %v485 = vld [vmem:[%s3 + $0x34] sm:$0xf]
        %v486 = vld [vmem:[%s3 + $0x38] sm:$0xf]
        %v487 = vld [vmem:[%s3 + $0x3c] sm:$0xf]
        %v504 = vunpack.c.l.b16 %v472
        %v505 = vunpack.c.l.b16 %v473
        %v506 = vunpack.c.l.b16 %v474
        %v507 = vunpack.c.l.b16 %v475
        %v508 = vunpack.c.l.b16 %v476
        %v509 = vunpack.c.l.b16 %v477
        %v510 = vunpack.c.l.b16 %v478
        %v511 = vunpack.c.l.b16 %v479
        %v512 = vunpack.c.l.b16 %v480
        %v513 = vunpack.c.l.b16 %v481
        %v514 = vunpack.c.l.b16 %v482
        %v515 = vunpack.c.l.b16 %v483
        %v516 = vunpack.c.l.b16 %v484
        %v517 = vunpack.c.l.b16 %v485
        %v518 = vunpack.c.l.b16 %v486
        %v519 = vunpack.c.l.b16 %v487
        %v520 = vpack.c.b16 %v505, %v504
        %v521 = vpack.c.b16 %v507, %v506
        %v522 = vpack.c.b16 %v509, %v508
        %v523 = vpack.c.b16 %v511, %v510
        %v524 = vpack.c.b16 %v513, %v512
        %v525 = vpack.c.b16 %v515, %v514
        %v526 = vpack.c.b16 %v517, %v516
        %v527 = vpack.c.b16 %v519, %v518
        %vm528 = vcmask 523264
        %v530 = vsel %vm528, %v520, 0
        %v533 = vsel %vm528, %v521, 0
        %v536 = vsel %vm528, %v522, 0
        %v539 = vsel %vm528, %v523, 0
        %v542 = vsel %vm528, %v524, 0
        %v545 = vsel %vm528, %v525, 0
        %v548 = vsel %vm528, %v526, 0
        %v551 = vsel %vm528, %v527, 0
        %553 = vmatprep.subr.bf16.mxu0 %v449
        %554 = vmatpush1.bf16.msra.mxu0 %v448
        %555 = vmatprep.subr.bf16.mxu0 %v451
        %556 = vmatpush1.bf16.msra.mxu0 %v450
        %557 = vmatprep.subr.bf16.mxu0 %v453
        %558 = vmatpush1.bf16.msra.mxu0 %v452
        %559 = vmatprep.subr.bf16.mxu0 %v455
        %560 = vmatpush1.bf16.msra.mxu0 %v454
        %561 = vmatprep.subr.bf16.mxu0 0
        %562 = vmatpush1.bf16.msra.mxu0 0
        %563 = vmatprep.subr.bf16.mxu0 0
        %564 = vmatpush1.bf16.msra.mxu0 0
        %565 = vmatprep.subr.bf16.mxu0 0
        %566 = vmatpush1.bf16.msra.mxu0 0
        %567 = vmatprep.subr.bf16.mxu0 0
        %568 = vmatpush1.bf16.msra.mxu0 0
        %569 = vmatprep.subr.bf16.mxu0 0
        %570 = vmatpush1.bf16.msra.mxu0 0
        %571 = vmatprep.subr.bf16.mxu0 0
        %572 = vmatpush1.bf16.msra.mxu0 0
        %573 = vmatprep.subr.bf16.mxu0 0
        %574 = vmatpush1.bf16.msra.mxu0 0
        %575 = vmatprep.subr.bf16.mxu0 0
        %576 = vmatpush1.bf16.msra.mxu0 0
        %577 = vmatprep.subr.bf16.mxu0 0
        %578 = vmatpush1.bf16.msra.mxu0 0
        %579 = vmatprep.subr.bf16.mxu0 0
        %580 = vmatpush1.bf16.msra.mxu0 0
        %581 = vmatprep.subr.bf16.mxu0 0
        %582 = vmatpush1.bf16.msra.mxu0 0
        %583 = vmatprep.subr.bf16.mxu0 0
        %584 = vmatpush1.bf16.msra.mxu0 0
        %585 = vmatprep.mubr.bf16.mxu0 0
        %586 = vmatmul.mubr.bf16.gmra.mrb[0].mxu0 %v530
        %v587 = vpop.f32.mrb[0].mxu0
        %v588 = vadd.f32 0.0, %v587
        %v589 = vpop.f32.mrb[0].mxu0
        %v590 = vadd.f32 0.0, %v589
        %v591 = vpop.f32.mrb[0].mxu0
        %v592 = vadd.f32 0.0, %v591
        %v593 = vpop.f32.mrb[0].mxu0
        %v594 = vadd.f32 0.0, %v593
        %595 = vmatprep.mubr.bf16.mxu0 0
        %596 = vmatmul.mubr.bf16.gmra.mrb[0].mxu0 %v533
        %v597 = vpop.f32.mrb[0].mxu0
        %v598 = vadd.f32 0.0, %v597
        %v599 = vpop.f32.mrb[0].mxu0
        %v600 = vadd.f32 0.0, %v599
        %v601 = vpop.f32.mrb[0].mxu0
        %v602 = vadd.f32 0.0, %v601
        %v603 = vpop.f32.mrb[0].mxu0
        %v604 = vadd.f32 0.0, %v603
        %605 = vmatprep.mubr.bf16.mxu0 0
        %606 = vmatmul.mubr.bf16.gmra.mrb[0].mxu0 %v536
        %v607 = vpop.f32.mrb[0].mxu0
        %v608 = vadd.f32 0.0, %v607
        %v609 = vpop.f32.mrb[0].mxu0
        %v610 = vadd.f32 0.0, %v609
        %v611 = vpop.f32.mrb[0].mxu0
        %v612 = vadd.f32 0.0, %v611
        %v613 = vpop.f32.mrb[0].mxu0
        %v614 = vadd.f32 0.0, %v613
        %615 = vmatprep.mubr.bf16.mxu0 0
        %616 = vmatmul.mubr.bf16.gmra.mrb[0].mxu0 %v539
        %v617 = vpop.f32.mrb[0].mxu0
        %v618 = vadd.f32 0.0, %v617
        %v619 = vpop.f32.mrb[0].mxu0
        %v620 = vadd.f32 0.0, %v619
        %v621 = vpop.f32.mrb[0].mxu0
        %v622 = vadd.f32 0.0, %v621
        %v623 = vpop.f32.mrb[0].mxu0
        %v624 = vadd.f32 0.0, %v623
        %625 = vmatprep.mubr.bf16.mxu0 0
        %626 = vmatmul.mubr.bf16.gmra.mrb[0].mxu0 %v542
        %v627 = vpop.f32.mrb[0].mxu0
        %v628 = vadd.f32 0.0, %v627
        %v629 = vpop.f32.mrb[0].mxu0
        %v630 = vadd.f32 0.0, %v629
        %v631 = vpop.f32.mrb[0].mxu0
        %v632 = vadd.f32 0.0, %v631
        %v633 = vpop.f32.mrb[0].mxu0
        %v634 = vadd.f32 0.0, %v633
        %635 = vmatprep.mubr.bf16.mxu0 0
        %636 = vmatmul.mubr.bf16.gmra.mrb[0].mxu0 %v545
        %v637 = vpop.f32.mrb[0].mxu0
        %v638 = vadd.f32 0.0, %v637
        %v639 = vpop.f32.mrb[0].mxu0
        %v640 = vadd.f32 0.0, %v639
        %v641 = vpop.f32.mrb[0].mxu0
        %v642 = vadd.f32 0.0, %v641
        %v643 = vpop.f32.mrb[0].mxu0
        %v644 = vadd.f32 0.0, %v643
        %645 = vmatprep.mubr.bf16.mxu0 0
        %646 = vmatmul.mubr.bf16.gmra.mrb[0].mxu0 %v548
        %v647 = vpop.f32.mrb[0].mxu0
        %v648 = vadd.f32 0.0, %v647
        %v649 = vpop.f32.mrb[0].mxu0
        %v650 = vadd.f32 0.0, %v649
        %v651 = vpop.f32.mrb[0].mxu0
        %v652 = vadd.f32 0.0, %v651
        %v653 = vpop.f32.mrb[0].mxu0
        %v654 = vadd.f32 0.0, %v653
        %655 = vmatprep.mubr.bf16.mxu0 0
        %656 = vmatmul.mubr.bf16.gmra.mrb[0].mxu0 %v551
        %v657 = vpop.f32.mrb[0].mxu0
        %v658 = vadd.f32 0.0, %v657
        %v659 = vpop.f32.mrb[0].mxu0
        %v660 = vadd.f32 0.0, %v659
        %v661 = vpop.f32.mrb[0].mxu0
        %v662 = vadd.f32 0.0, %v661
        %v663 = vpop.f32.mrb[0].mxu0
        %v664 = vadd.f32 0.0, %v663
        %665 = vdwg.mxu0
        %v682 = vunpack.c.l.b16 %v456
        %v683 = vunpack.c.l.b16 %v457
        %v684 = vunpack.c.l.b16 %v458
        %v685 = vunpack.c.l.b16 %v459
        %v686 = vunpack.c.l.b16 %v460
        %v687 = vunpack.c.l.b16 %v461
        %v688 = vunpack.c.l.b16 %v462
        %v689 = vunpack.c.l.b16 %v463
        %v690 = vunpack.c.l.b16 %v464
        %v691 = vunpack.c.l.b16 %v465
        %v692 = vunpack.c.l.b16 %v466
        %v693 = vunpack.c.l.b16 %v467
        %v694 = vunpack.c.l.b16 %v468
        %v695 = vunpack.c.l.b16 %v469
        %v696 = vunpack.c.l.b16 %v470
        %v697 = vunpack.c.l.b16 %v471
        %v698 = vpack.c.b16 %v683, %v682
        %v699 = vpack.c.b16 %v685, %v684
        %v700 = vpack.c.b16 %v687, %v686
        %v701 = vpack.c.b16 %v689, %v688
        %v702 = vpack.c.b16 %v691, %v690
        %v703 = vpack.c.b16 %v693, %v692
        %v704 = vpack.c.b16 %v695, %v694
        %v705 = vpack.c.b16 %v697, %v696
        %v707 = vsel %vm528, %v698, 0
        %v710 = vsel %vm528, %v699, 0
        %v713 = vsel %vm528, %v700, 0
        %v716 = vsel %vm528, %v701, 0
        %v719 = vsel %vm528, %v702, 0
        %v722 = vsel %vm528, %v703, 0
        %v725 = vsel %vm528, %v704, 0
        %v728 = vsel %vm528, %v705, 0
        %730 = vmatprep.subr.bf16.mxu0 %v425
        %731 = vmatpush1.bf16.msra.mxu0 %v424
        %732 = vmatprep.subr.bf16.mxu0 %v427
        %733 = vmatpush1.bf16.msra.mxu0 %v426
        %734 = vmatprep.subr.bf16.mxu0 %v429
        %735 = vmatpush1.bf16.msra.mxu0 %v428
        %736 = vmatprep.subr.bf16.mxu0 %v431
        %737 = vmatpush1.bf16.msra.mxu0 %v430
        %738 = vmatprep.subr.bf16.mxu0 0
        %739 = vmatpush1.bf16.msra.mxu0 0
        %740 = vmatprep.subr.bf16.mxu0 0
        %741 = vmatpush1.bf16.msra.mxu0 0
        %742 = vmatprep.subr.bf16.mxu0 0
        %743 = vmatpush1.bf16.msra.mxu0 0
        %744 = vmatprep.subr.bf16.mxu0 0
        %745 = vmatpush1.bf16.msra.mxu0 0
        %746 = vmatprep.subr.bf16.mxu0 0
        %747 = vmatpush1.bf16.msra.mxu0 0
        %748 = vmatprep.subr.bf16.mxu0 0
        %749 = vmatpush1.bf16.msra.mxu0 0
        %750 = vmatprep.subr.bf16.mxu0 0
        %751 = vmatpush1.bf16.msra.mxu0 0
        %752 = vmatprep.subr.bf16.mxu0 0
        %753 = vmatpush1.bf16.msra.mxu0 0
        %754 = vmatprep.subr.bf16.mxu0 0
        %755 = vmatpush1.bf16.msra.mxu0 0
        %756 = vmatprep.subr.bf16.mxu0 0
        %757 = vmatpush1.bf16.msra.mxu0 0
        %758 = vmatprep.subr.bf16.mxu0 0
        %759 = vmatpush1.bf16.msra.mxu0 0
        %760 = vmatprep.subr.bf16.mxu0 0
        %761 = vmatpush1.bf16.msra.mxu0 0
        %762 = vmatprep.mubr.bf16.mxu0 0
        %763 = vmatmul.mubr.bf16.gmra.mrb[0].mxu0 %v707
        %v764 = vpop.f32.mrb[0].mxu0
        %v765 = vadd.f32 %v588, %v764
        %v766 = vpop.f32.mrb[0].mxu0
        %v767 = vadd.f32 %v590, %v766
        %v768 = vpop.f32.mrb[0].mxu0
        %v769 = vadd.f32 %v592, %v768
        %v770 = vpop.f32.mrb[0].mxu0
        %v771 = vadd.f32 %v594, %v770
        %772 = vmatprep.mubr.bf16.mxu0 0
        %773 = vmatmul.mubr.bf16.gmra.mrb[0].mxu0 %v710
        %v774 = vpop.f32.mrb[0].mxu0
        %v775 = vadd.f32 %v598, %v774
        %v776 = vpop.f32.mrb[0].mxu0
        %v777 = vadd.f32 %v600, %v776
        %v778 = vpop.f32.mrb[0].mxu0
        %v779 = vadd.f32 %v602, %v778
        %v780 = vpop.f32.mrb[0].mxu0
        %v781 = vadd.f32 %v604, %v780
        %782 = vmatprep.mubr.bf16.mxu0 0
        %783 = vmatmul.mubr.bf16.gmra.mrb[0].mxu0 %v713
        %v784 = vpop.f32.mrb[0].mxu0
        %v785 = vadd.f32 %v608, %v784
        %v786 = vpop.f32.mrb[0].mxu0
        %v787 = vadd.f32 %v610, %v786
        %v788 = vpop.f32.mrb[0].mxu0
        %v789 = vadd.f32 %v612, %v788
        %v790 = vpop.f32.mrb[0].mxu0
        %v791 = vadd.f32 %v614, %v790
        %792 = vmatprep.mubr.bf16.mxu0 0
        %793 = vmatmul.mubr.bf16.gmra.mrb[0].mxu0 %v716
        %v794 = vpop.f32.mrb[0].mxu0
        %v795 = vadd.f32 %v618, %v794
        %v796 = vpop.f32.mrb[0].mxu0
        %v797 = vadd.f32 %v620, %v796
        %v798 = vpop.f32.mrb[0].mxu0
        %v799 = vadd.f32 %v622, %v798
        %v800 = vpop.f32.mrb[0].mxu0
        %v801 = vadd.f32 %v624, %v800
        %802 = vmatprep.mubr.bf16.mxu0 0
        %803 = vmatmul.mubr.bf16.gmra.mrb[0].mxu0 %v719
        %v804 = vpop.f32.mrb[0].mxu0
        %v805 = vadd.f32 %v628, %v804
        %v806 = vpop.f32.mrb[0].mxu0
        %v807 = vadd.f32 %v630, %v806
        %v808 = vpop.f32.mrb[0].mxu0
        %v809 = vadd.f32 %v632, %v808
        %v810 = vpop.f32.mrb[0].mxu0
        %v811 = vadd.f32 %v634, %v810
        %812 = vmatprep.mubr.bf16.mxu0 0
        %813 = vmatmul.mubr.bf16.gmra.mrb[0].mxu0 %v722
        %v814 = vpop.f32.mrb[0].mxu0
        %v815 = vadd.f32 %v638, %v814
        %v816 = vpop.f32.mrb[0].mxu0
        %v817 = vadd.f32 %v640, %v816
        %v818 = vpop.f32.mrb[0].mxu0
        %v819 = vadd.f32 %v642, %v818
        %v820 = vpop.f32.mrb[0].mxu0
        %v821 = vadd.f32 %v644, %v820
        %822 = vmatprep.mubr.bf16.mxu0 0
        %823 = vmatmul.mubr.bf16.gmra.mrb[0].mxu0 %v725
        %v824 = vpop.f32.mrb[0].mxu0
        %v825 = vadd.f32 %v648, %v824
        %v826 = vpop.f32.mrb[0].mxu0
        %v827 = vadd.f32 %v650, %v826
        %v828 = vpop.f32.mrb[0].mxu0
        %v829 = vadd.f32 %v652, %v828
        %v830 = vpop.f32.mrb[0].mxu0
        %v831 = vadd.f32 %v654, %v830
        %832 = vmatprep.mubr.bf16.mxu0 0
        %833 = vmatmul.mubr.bf16.gmra.mrb[0].mxu0 %v728
        %v834 = vpop.f32.mrb[0].mxu0
        %v835 = vadd.f32 %v658, %v834
        %v836 = vpop.f32.mrb[0].mxu0
        %v837 = vadd.f32 %v660, %v836
        %v838 = vpop.f32.mrb[0].mxu0
        %v839 = vadd.f32 %v662, %v838
        %v840 = vpop.f32.mrb[0].mxu0
        %v841 = vadd.f32 %v664, %v840
        %842 = vdwg.mxu0
        %v843 = vld [vmem:[%s4] sm:$0xff]
        %v844 = vld [vmem:[%s4 + $0x8] sm:$0xff]
        %v845 = vld [vmem:[%s4 + $0x10] sm:$0xff]
        %v846 = vld [vmem:[%s4 + $0x18] sm:$0xff]
        %v847 = vld [vmem:[%s4 + $0x20] sm:$0xff]
        %v848 = vld [vmem:[%s4 + $0x28] sm:$0xff]
        %v849 = vld [vmem:[%s4 + $0x30] sm:$0xff]
        %v850 = vld [vmem:[%s4 + $0x38] sm:$0xff]
        %v851 = vld [vmem:[%s4 + $0x40] sm:$0xff]
        %v852 = vld [vmem:[%s4 + $0x48] sm:$0xff]
        %v853 = vld [vmem:[%s4 + $0x50] sm:$0xff]
        %v854 = vld [vmem:[%s4 + $0x58] sm:$0xff]
        %v855 = vld [vmem:[%s4 + $0x60] sm:$0xff]
        %v856 = vld [vmem:[%s4 + $0x68] sm:$0xff]
        %v857 = vld [vmem:[%s4 + $0x70] sm:$0xff]
        %v858 = vld [vmem:[%s4 + $0x78] sm:$0xff]
        %860 = vset.pattern.permute.xlu0 0
        %861 = vperm.xlu0 %860, %v843
        %v862 = vpop.permute.xlu0 %861
        %865 = vset.pattern.permute.xlu0 0
        %866 = vperm.xlu0 %865, %v844
        %v867 = vpop.permute.xlu0 %866
        %870 = vset.pattern.permute.xlu0 0
        %871 = vperm.xlu0 %870, %v845
        %v872 = vpop.permute.xlu0 %871
        %875 = vset.pattern.permute.xlu0 0
        %876 = vperm.xlu0 %875, %v846
        %v877 = vpop.permute.xlu0 %876
        %880 = vset.pattern.permute.xlu0 0
        %881 = vperm.xlu0 %880, %v847
        %v882 = vpop.permute.xlu0 %881
        %885 = vset.pattern.permute.xlu0 0
        %886 = vperm.xlu0 %885, %v848
        %v887 = vpop.permute.xlu0 %886
        %890 = vset.pattern.permute.xlu0 0
        %891 = vperm.xlu0 %890, %v849
        %v892 = vpop.permute.xlu0 %891
        %895 = vset.pattern.permute.xlu0 0
        %896 = vperm.xlu0 %895, %v850
        %v897 = vpop.permute.xlu0 %896
        %900 = vset.pattern.permute.xlu0 0
        %901 = vperm.xlu0 %900, %v851
        %v902 = vpop.permute.xlu0 %901
        %905 = vset.pattern.permute.xlu0 0
        %906 = vperm.xlu0 %905, %v852
        %v907 = vpop.permute.xlu0 %906
        %910 = vset.pattern.permute.xlu0 0
        %911 = vperm.xlu0 %910, %v853
        %v912 = vpop.permute.xlu0 %911
        %915 = vset.pattern.permute.xlu0 0
        %916 = vperm.xlu0 %915, %v854
        %v917 = vpop.permute.xlu0 %916
        %920 = vset.pattern.permute.xlu0 0
        %921 = vperm.xlu0 %920, %v855
        %v922 = vpop.permute.xlu0 %921
        %925 = vset.pattern.permute.xlu0 0
        %926 = vperm.xlu0 %925, %v856
        %v927 = vpop.permute.xlu0 %926
        %930 = vset.pattern.permute.xlu0 0
        %931 = vperm.xlu0 %930, %v857
        %v932 = vpop.permute.xlu0 %931
        %935 = vset.pattern.permute.xlu0 0
        %936 = vperm.xlu0 %935, %v858
        %v937 = vpop.permute.xlu0 %936
        %v939 = vadd.f32 %v765, %v862
        %v940 = vadd.f32 %v767, %v862
        %v941 = vadd.f32 %v769, %v867
        %v942 = vadd.f32 %v771, %v867
        %v943 = vadd.f32 %v775, %v872
        %v944 = vadd.f32 %v777, %v872
        %v945 = vadd.f32 %v779, %v877
        %v946 = vadd.f32 %v781, %v877
        %v947 = vadd.f32 %v785, %v882
        %v948 = vadd.f32 %v787, %v882
        %v949 = vadd.f32 %v789, %v887
        %v950 = vadd.f32 %v791, %v887
        %v951 = vadd.f32 %v795, %v892
        %v952 = vadd.f32 %v797, %v892
        %v953 = vadd.f32 %v799, %v897
        %v954 = vadd.f32 %v801, %v897
        %v955 = vadd.f32 %v805, %v902
        %v956 = vadd.f32 %v807, %v902
        %v957 = vadd.f32 %v809, %v907
        %v958 = vadd.f32 %v811, %v907
        %v959 = vadd.f32 %v815, %v912
        %v960 = vadd.f32 %v817, %v912
        %v961 = vadd.f32 %v819, %v917
        %v962 = vadd.f32 %v821, %v917
        %v963 = vadd.f32 %v825, %v922
        %v964 = vadd.f32 %v827, %v922
        %v965 = vadd.f32 %v829, %v927
        %v966 = vadd.f32 %v831, %v927
        %v967 = vadd.f32 %v835, %v932
        %v968 = vadd.f32 %v837, %v932
        %v969 = vadd.f32 %v839, %v937
        %v970 = vadd.f32 %v841, %v937
        %v971 = vmax.f32 %v939, 0.0
        %v972 = vmax.f32 %v940, 0.0
        %v973 = vmax.f32 %v941, 0.0
        %v974 = vmax.f32 %v942, 0.0
        %v975 = vmax.f32 %v943, 0.0
        %v976 = vmax.f32 %v944, 0.0
        %v977 = vmax.f32 %v945, 0.0
        %v978 = vmax.f32 %v946, 0.0
        %v979 = vmax.f32 %v947, 0.0
        %v980 = vmax.f32 %v948, 0.0
        %v981 = vmax.f32 %v949, 0.0
        %v982 = vmax.f32 %v950, 0.0
        %v983 = vmax.f32 %v951, 0.0
        %v984 = vmax.f32 %v952, 0.0
        %v985 = vmax.f32 %v953, 0.0
        %v986 = vmax.f32 %v954, 0.0
        %v987 = vmax.f32 %v955, 0.0
        %v988 = vmax.f32 %v956, 0.0
        %v989 = vmax.f32 %v957, 0.0
        %v990 = vmax.f32 %v958, 0.0
        %v991 = vmax.f32 %v959, 0.0
        %v992 = vmax.f32 %v960, 0.0
        %v993 = vmax.f32 %v961, 0.0
        %v994 = vmax.f32 %v962, 0.0
        %v995 = vmax.f32 %v963, 0.0
        %v996 = vmax.f32 %v964, 0.0
        %v997 = vmax.f32 %v965, 0.0
        %v998 = vmax.f32 %v966, 0.0
        %v999 = vmax.f32 %v967, 0.0
        %v1000 = vmax.f32 %v968, 0.0
        %v1001 = vmax.f32 %v969, 0.0
        %v1002 = vmax.f32 %v970, 0.0
        %v1003 = vld [vmem:[%s5] sm:$0xf]
        %v1004 = vld [vmem:[%s5 + $0x4] sm:$0xf]
        %v1005 = vld [vmem:[%s5 + $0x8] sm:$0xf]
        %v1006 = vld [vmem:[%s5 + $0xc] sm:$0xf]
        %v1007 = vld [vmem:[%s5 + $0x10] sm:$0xf]
        %v1008 = vld [vmem:[%s5 + $0x14] sm:$0xf]
        %v1009 = vld [vmem:[%s5 + $0x18] sm:$0xf]
        %v1010 = vld [vmem:[%s5 + $0x1c] sm:$0xf]
        %v1011 = vld [vmem:[%s5 + $0x20] sm:$0xf]
        %v1012 = vld [vmem:[%s5 + $0x24] sm:$0xf]
        %v1013 = vld [vmem:[%s5 + $0x28] sm:$0xf]
        %v1014 = vld [vmem:[%s5 + $0x2c] sm:$0xf]
        %v1015 = vld [vmem:[%s5 + $0x30] sm:$0xf]
        %v1016 = vld [vmem:[%s5 + $0x34] sm:$0xf]
        %v1017 = vld [vmem:[%s5 + $0x38] sm:$0xf]
        %v1018 = vld [vmem:[%s5 + $0x3c] sm:$0xf]
        %v1019 = vpack.c.bf16 %v973, %v971
        %v1020 = vpack.c.bf16 %v974, %v972
        %v1021 = vpack.c.bf16 %v977, %v975
        %v1022 = vpack.c.bf16 %v978, %v976
        %v1023 = vpack.c.bf16 %v981, %v979
        %v1024 = vpack.c.bf16 %v982, %v980
        %v1025 = vpack.c.bf16 %v985, %v983
        %v1026 = vpack.c.bf16 %v986, %v984
        %v1027 = vpack.c.bf16 %v989, %v987
        %v1028 = vpack.c.bf16 %v990, %v988
        %v1029 = vpack.c.bf16 %v993, %v991
        %v1030 = vpack.c.bf16 %v994, %v992
        %v1031 = vpack.c.bf16 %v997, %v995
        %v1032 = vpack.c.bf16 %v998, %v996
        %v1033 = vpack.c.bf16 %v1001, %v999
        %v1034 = vpack.c.bf16 %v1002, %v1000
        %v1035 = vld [vmem:[%s6] sm:$0xff]
        %v1036 = vld [vmem:[%s6 + $0x8] sm:$0xff]
        %v1037 = vld [vmem:[%s6 + $0x10] sm:$0xff]
        %v1038 = vld [vmem:[%s6 + $0x18] sm:$0xff]
        %v1039 = vld [vmem:[%s6 + $0x20] sm:$0xff]
        %v1040 = vld [vmem:[%s6 + $0x28] sm:$0xff]
        %v1041 = vld [vmem:[%s6 + $0x30] sm:$0xff]
        %v1042 = vld [vmem:[%s6 + $0x38] sm:$0xff]
        %v1043 = vld [vmem:[%s6 + $0x40] sm:$0xff]
        %v1044 = vld [vmem:[%s6 + $0x48] sm:$0xff]
        %v1045 = vld [vmem:[%s6 + $0x50] sm:$0xff]
        %v1046 = vld [vmem:[%s6 + $0x58] sm:$0xff]
        %v1047 = vld [vmem:[%s6 + $0x60] sm:$0xff]
        %v1048 = vld [vmem:[%s6 + $0x68] sm:$0xff]
        %v1049 = vld [vmem:[%s6 + $0x70] sm:$0xff]
        %v1050 = vld [vmem:[%s6 + $0x78] sm:$0xff]
        %1052 = vset.pattern.permute.xlu0 0
        %1053 = vperm.xlu0 %1052, %v1035
        %v1054 = vpop.permute.xlu0 %1053
        %1057 = vset.pattern.permute.xlu0 0
        %1058 = vperm.xlu0 %1057, %v1036
        %v1059 = vpop.permute.xlu0 %1058
        %1062 = vset.pattern.permute.xlu0 0
        %1063 = vperm.xlu0 %1062, %v1037
        %v1064 = vpop.permute.xlu0 %1063
        %1067 = vset.pattern.permute.xlu0 0
        %1068 = vperm.xlu0 %1067, %v1038
        %v1069 = vpop.permute.xlu0 %1068
        %1072 = vset.pattern.permute.xlu0 0
        %1073 = vperm.xlu0 %1072, %v1039
        %v1074 = vpop.permute.xlu0 %1073
        %1077 = vset.pattern.permute.xlu0 0
        %1078 = vperm.xlu0 %1077, %v1040
        %v1079 = vpop.permute.xlu0 %1078
        %1082 = vset.pattern.permute.xlu0 0
        %1083 = vperm.xlu0 %1082, %v1041
        %v1084 = vpop.permute.xlu0 %1083
        %1087 = vset.pattern.permute.xlu0 0
        %1088 = vperm.xlu0 %1087, %v1042
        %v1089 = vpop.permute.xlu0 %1088
        %1092 = vset.pattern.permute.xlu0 0
        %1093 = vperm.xlu0 %1092, %v1043
        %v1094 = vpop.permute.xlu0 %1093
        %1097 = vset.pattern.permute.xlu0 0
        %1098 = vperm.xlu0 %1097, %v1044
        %v1099 = vpop.permute.xlu0 %1098
        %1102 = vset.pattern.permute.xlu0 0
        %1103 = vperm.xlu0 %1102, %v1045
        %v1104 = vpop.permute.xlu0 %1103
        %1107 = vset.pattern.permute.xlu0 0
        %1108 = vperm.xlu0 %1107, %v1046
        %v1109 = vpop.permute.xlu0 %1108
        %1112 = vset.pattern.permute.xlu0 0
        %1113 = vperm.xlu0 %1112, %v1047
        %v1114 = vpop.permute.xlu0 %1113
        %1117 = vset.pattern.permute.xlu0 0
        %1118 = vperm.xlu0 %1117, %v1048
        %v1119 = vpop.permute.xlu0 %1118
        %1122 = vset.pattern.permute.xlu0 0
        %1123 = vperm.xlu0 %1122, %v1049
        %v1124 = vpop.permute.xlu0 %1123
        %1127 = vset.pattern.permute.xlu0 0
        %1128 = vperm.xlu0 %1127, %v1050
        %v1129 = vpop.permute.xlu0 %1128
        %v1147 = vunpack.c.l.b16 %v1003
        %v1148 = vunpack.c.l.b16 %v1004
        %v1149 = vunpack.c.l.b16 %v1005
        %v1150 = vunpack.c.l.b16 %v1006
        %v1151 = vunpack.c.l.b16 %v1007
        %v1152 = vunpack.c.l.b16 %v1008
        %v1153 = vunpack.c.l.b16 %v1009
        %v1154 = vunpack.c.l.b16 %v1010
        %v1155 = vunpack.c.l.b16 %v1011
        %v1156 = vunpack.c.l.b16 %v1012
        %v1157 = vunpack.c.l.b16 %v1013
        %v1158 = vunpack.c.l.b16 %v1014
        %v1159 = vunpack.c.l.b16 %v1015
        %v1160 = vunpack.c.l.b16 %v1016
        %v1161 = vunpack.c.l.b16 %v1017
        %v1162 = vunpack.c.l.b16 %v1018
        %v1163 = vpack.c.b16 %v1148, %v1147
        %v1164 = vpack.c.b16 %v1150, %v1149
        %v1165 = vpack.c.b16 %v1152, %v1151
        %v1166 = vpack.c.b16 %v1154, %v1153
        %v1167 = vpack.c.b16 %v1156, %v1155
        %v1168 = vpack.c.b16 %v1158, %v1157
        %v1169 = vpack.c.b16 %v1160, %v1159
        %v1170 = vpack.c.b16 %v1162, %v1161
        %1179 = vmatprep.subr.bf16.mxu0 %v1020
        %1180 = vmatpush1.bf16.msra.mxu0 %v1019
        %1181 = vmatprep.subr.bf16.mxu0 %v1022
        %1182 = vmatpush1.bf16.msra.mxu0 %v1021
        %1183 = vmatprep.subr.bf16.mxu0 %v1024
        %1184 = vmatpush1.bf16.msra.mxu0 %v1023
        %1185 = vmatprep.subr.bf16.mxu0 %v1026
        %1186 = vmatpush1.bf16.msra.mxu0 %v1025
        %1187 = vmatprep.subr.bf16.mxu0 %v1028
        %1188 = vmatpush1.bf16.msra.mxu0 %v1027
        %1189 = vmatprep.subr.bf16.mxu0 %v1030
        %1190 = vmatpush1.bf16.msra.mxu0 %v1029
        %1191 = vmatprep.subr.bf16.mxu0 %v1032
        %1192 = vmatpush1.bf16.msra.mxu0 %v1031
        %1193 = vmatprep.subr.bf16.mxu0 %v1034
        %1194 = vmatpush1.bf16.msra.mxu0 %v1033
        %1195 = vmatprep.subr.bf16.mxu0 0
        %1196 = vmatpush1.bf16.msra.mxu0 0
        %1197 = vmatprep.subr.bf16.mxu0 0
        %1198 = vmatpush1.bf16.msra.mxu0 0
        %1199 = vmatprep.subr.bf16.mxu0 0
        %1200 = vmatpush1.bf16.msra.mxu0 0
        %1201 = vmatprep.subr.bf16.mxu0 0
        %1202 = vmatpush1.bf16.msra.mxu0 0
        %1203 = vmatprep.subr.bf16.mxu0 0
        %1204 = vmatpush1.bf16.msra.mxu0 0
        %1205 = vmatprep.subr.bf16.mxu0 0
        %1206 = vmatpush1.bf16.msra.mxu0 0
        %1207 = vmatprep.subr.bf16.mxu0 0
        %1208 = vmatpush1.bf16.msra.mxu0 0
        %1209 = vmatprep.subr.bf16.mxu0 0
        %1210 = vmatpush1.bf16.msra.mxu0 0
        %1211 = vmatprep.mubr.bf16.mxu0 0
        %1212 = vmatmul.mubr.bf16.gmra.mrb[0].mxu0 %v1163
        %v1213 = vpop.f32.mrb[0].mxu0
        %v1214 = vadd.f32 %v1054, %v1213
        %v1215 = vpop.f32.mrb[0].mxu0
        %v1216 = vadd.f32 %v1054, %v1215
        %v1217 = vpop.f32.mrb[0].mxu0
        %v1218 = vadd.f32 %v1059, %v1217
        %v1219 = vpop.f32.mrb[0].mxu0
        %v1220 = vadd.f32 %v1059, %v1219
        %1221 = vmatprep.mubr.bf16.mxu0 0
        %1222 = vmatmul.mubr.bf16.gmra.mrb[0].mxu0 %v1164
        %v1223 = vpop.f32.mrb[0].mxu0
        %v1224 = vadd.f32 %v1064, %v1223
        %v1225 = vpop.f32.mrb[0].mxu0
        %v1226 = vadd.f32 %v1064, %v1225
        %v1227 = vpop.f32.mrb[0].mxu0
        %v1228 = vadd.f32 %v1069, %v1227
        %v1229 = vpop.f32.mrb[0].mxu0
        %v1230 = vadd.f32 %v1069, %v1229
        %1231 = vmatprep.mubr.bf16.mxu0 0
        %1232 = vmatmul.mubr.bf16.gmra.mrb[0].mxu0 %v1165
        %v1233 = vpop.f32.mrb[0].mxu0
        %v1234 = vadd.f32 %v1074, %v1233
        %v1235 = vpop.f32.mrb[0].mxu0
        %v1236 = vadd.f32 %v1074, %v1235
        %v1237 = vpop.f32.mrb[0].mxu0
        %v1238 = vadd.f32 %v1079, %v1237
        %v1239 = vpop.f32.mrb[0].mxu0
        %v1240 = vadd.f32 %v1079, %v1239
        %1241 = vmatprep.mubr.bf16.mxu0 0
        %1242 = vmatmul.mubr.bf16.gmra.mrb[0].mxu0 %v1166
        %v1243 = vpop.f32.mrb[0].mxu0
        %v1244 = vadd.f32 %v1084, %v1243
        %v1245 = vpop.f32.mrb[0].mxu0
        %v1246 = vadd.f32 %v1084, %v1245
        %v1247 = vpop.f32.mrb[0].mxu0
        %v1248 = vadd.f32 %v1089, %v1247
        %v1249 = vpop.f32.mrb[0].mxu0
        %v1250 = vadd.f32 %v1089, %v1249
        %1251 = vmatprep.mubr.bf16.mxu0 0
        %1252 = vmatmul.mubr.bf16.gmra.mrb[0].mxu0 %v1167
        %v1253 = vpop.f32.mrb[0].mxu0
        %v1254 = vadd.f32 %v1094, %v1253
        %v1255 = vpop.f32.mrb[0].mxu0
        %v1256 = vadd.f32 %v1094, %v1255
        %v1257 = vpop.f32.mrb[0].mxu0
        %v1258 = vadd.f32 %v1099, %v1257
        %v1259 = vpop.f32.mrb[0].mxu0
        %v1260 = vadd.f32 %v1099, %v1259
        %1261 = vmatprep.mubr.bf16.mxu0 0
        %1262 = vmatmul.mubr.bf16.gmra.mrb[0].mxu0 %v1168
        %v1263 = vpop.f32.mrb[0].mxu0
        %v1264 = vadd.f32 %v1104, %v1263
        %v1265 = vpop.f32.mrb[0].mxu0
        %v1266 = vadd.f32 %v1104, %v1265
        %v1267 = vpop.f32.mrb[0].mxu0
        %v1268 = vadd.f32 %v1109, %v1267
        %v1269 = vpop.f32.mrb[0].mxu0
        %v1270 = vadd.f32 %v1109, %v1269
        %1271 = vmatprep.mubr.bf16.mxu0 0
        %1272 = vmatmul.mubr.bf16.gmra.mrb[0].mxu0 %v1169
        %v1273 = vpop.f32.mrb[0].mxu0
        %v1274 = vadd.f32 %v1114, %v1273
        %v1275 = vpop.f32.mrb[0].mxu0
        %v1276 = vadd.f32 %v1114, %v1275
        %v1277 = vpop.f32.mrb[0].mxu0
        %v1278 = vadd.f32 %v1119, %v1277
        %v1279 = vpop.f32.mrb[0].mxu0
        %v1280 = vadd.f32 %v1119, %v1279
        %1281 = vmatprep.mubr.bf16.mxu0 0
        %1282 = vmatmul.mubr.bf16.gmra.mrb[0].mxu0 %v1170
        %v1283 = vpop.f32.mrb[0].mxu0
        %v1284 = vadd.f32 %v1124, %v1283
        %v1285 = vpop.f32.mrb[0].mxu0
        %v1286 = vadd.f32 %v1124, %v1285
        %v1287 = vpop.f32.mrb[0].mxu0
        %v1288 = vadd.f32 %v1129, %v1287
        %v1289 = vpop.f32.mrb[0].mxu0
        %v1290 = vadd.f32 %v1129, %v1289
        %1291 = vdwg.mxu0
        %v1292 = vmax.f32 %v1214, 0.0
        %v1293 = vmax.f32 %v1216, 0.0
        %v1294 = vmax.f32 %v1218, 0.0
        %v1295 = vmax.f32 %v1220, 0.0
        %v1296 = vmax.f32 %v1224, 0.0
        %v1297 = vmax.f32 %v1226, 0.0
        %v1298 = vmax.f32 %v1228, 0.0
        %v1299 = vmax.f32 %v1230, 0.0
        %v1300 = vmax.f32 %v1234, 0.0
        %v1301 = vmax.f32 %v1236, 0.0
        %v1302 = vmax.f32 %v1238, 0.0
        %v1303 = vmax.f32 %v1240, 0.0
        %v1304 = vmax.f32 %v1244, 0.0
        %v1305 = vmax.f32 %v1246, 0.0
        %v1306 = vmax.f32 %v1248, 0.0
        %v1307 = vmax.f32 %v1250, 0.0
        %v1308 = vmax.f32 %v1254, 0.0
        %v1309 = vmax.f32 %v1256, 0.0
        %v1310 = vmax.f32 %v1258, 0.0
        %v1311 = vmax.f32 %v1260, 0.0
        %v1312 = vmax.f32 %v1264, 0.0
        %v1313 = vmax.f32 %v1266, 0.0
        %v1314 = vmax.f32 %v1268, 0.0
        %v1315 = vmax.f32 %v1270, 0.0
        %v1316 = vmax.f32 %v1274, 0.0
        %v1317 = vmax.f32 %v1276, 0.0
        %v1318 = vmax.f32 %v1278, 0.0
        %v1319 = vmax.f32 %v1280, 0.0
        %v1320 = vmax.f32 %v1284, 0.0
        %v1321 = vmax.f32 %v1286, 0.0
        %v1322 = vmax.f32 %v1288, 0.0
        %v1323 = vmax.f32 %v1290, 0.0
        %v1324 = vld [vmem:[%s7] sm:$0x1]
        %v1325 = vpack.c.bf16 %v1294, %v1292
        %v1326 = vpack.c.bf16 %v1295, %v1293
        %v1327 = vpack.c.bf16 %v1298, %v1296
        %v1328 = vpack.c.bf16 %v1299, %v1297
        %v1329 = vpack.c.bf16 %v1302, %v1300
        %v1330 = vpack.c.bf16 %v1303, %v1301
        %v1331 = vpack.c.bf16 %v1306, %v1304
        %v1332 = vpack.c.bf16 %v1307, %v1305
        %v1333 = vpack.c.bf16 %v1310, %v1308
        %v1334 = vpack.c.bf16 %v1311, %v1309
        %v1335 = vpack.c.bf16 %v1314, %v1312
        %v1336 = vpack.c.bf16 %v1315, %v1313
        %v1337 = vpack.c.bf16 %v1318, %v1316
        %v1338 = vpack.c.bf16 %v1319, %v1317
        %v1339 = vpack.c.bf16 %v1322, %v1320
        %v1340 = vpack.c.bf16 %v1323, %v1321
        %v1341 = vld [vmem:[%s8] sm:$0x3]
        %1343 = vset.pattern.permute.xlu0 0
        %1344 = vperm.xlu0 %1343, %v1341
        %v1345 = vpop.permute.xlu0 %1344
        %1347 = vmatprep.subr.bf16.mxu0 %v1326
        %1348 = vmatpush1.bf16.msra.mxu0 %v1325
        %1349 = vmatprep.subr.bf16.mxu0 %v1328
        %1350 = vmatpush1.bf16.msra.mxu0 %v1327
        %1351 = vmatprep.subr.bf16.mxu0 %v1330
        %1352 = vmatpush1.bf16.msra.mxu0 %v1329
        %1353 = vmatprep.subr.bf16.mxu0 %v1332
        %1354 = vmatpush1.bf16.msra.mxu0 %v1331
        %1355 = vmatprep.subr.bf16.mxu0 %v1334
        %1356 = vmatpush1.bf16.msra.mxu0 %v1333
        %1357 = vmatprep.subr.bf16.mxu0 %v1336
        %1358 = vmatpush1.bf16.msra.mxu0 %v1335
        %1359 = vmatprep.subr.bf16.mxu0 %v1338
        %1360 = vmatpush1.bf16.msra.mxu0 %v1337
        %1361 = vmatprep.subr.bf16.mxu0 %v1340
        %1362 = vmatpush1.bf16.msra.mxu0 %v1339
        %1363 = vmatprep.subr.bf16.mxu0 0
        %1364 = vmatpush1.bf16.msra.mxu0 0
        %1365 = vmatprep.subr.bf16.mxu0 0
        %1366 = vmatpush1.bf16.msra.mxu0 0
        %1367 = vmatprep.subr.bf16.mxu0 0
        %1368 = vmatpush1.bf16.msra.mxu0 0
        %1369 = vmatprep.subr.bf16.mxu0 0
        %1370 = vmatpush1.bf16.msra.mxu0 0
        %1371 = vmatprep.subr.bf16.mxu0 0
        %1372 = vmatpush1.bf16.msra.mxu0 0
        %1373 = vmatprep.subr.bf16.mxu0 0
        %1374 = vmatpush1.bf16.msra.mxu0 0
        %1375 = vmatprep.subr.bf16.mxu0 0
        %1376 = vmatpush1.bf16.msra.mxu0 0
        %1377 = vmatprep.subr.bf16.mxu0 0
        %1378 = vmatpush1.bf16.msra.mxu0 0
        %1379 = vmatprep.mubr.bf16.mxu0 0
        %1380 = vmatmul.mubr.bf16.gmra.mrb[0].mxu0 %v1324
        %v1381 = vpop.f32.mrb[0].mxu0
        %v1382 = vadd.f32 %v1345, %v1381
        %v1383 = vpop.f32.mrb[0].mxu0
        %v1384 = vadd.f32 %v1345, %v1383
        %v1385 = vpop.f32.mrb[0].mxu0
        %v1386 = vpop.f32.mrb[0].mxu0
        %1387 = vdwg.mxu0
        %v1390 = vcombine.low %v1382, %v1384
        %v1392 = vunpack.c.l.s4 1983009808
        %v1393 = vunpack.c.0.s8 %v1392
        %v1394 = vlaneseq
        %v1395 = vshrl.u32 %v1394, 7
        %v1396 = vsub.s32 %v1393, %v1395
        %v1397 = vrot.slane %v1390, %v1396
        %1399 = vst [vmem:[%s394] sm:$0xf] %v1397
        %s1400 = sand.u32 %s251, 1
        %s1401 = scalar_lea.sflag [#allocation4], %s1400
        %s1402 = sand.u32 %s251, 1
        %s1403 = smul.addr %s1402, 4
        %s1404 = scalar_lea.vmem [#allocation5], %s1403
        // Predicated region
        $region61: #{tpu_custom_call.1} parent=55 // pred_check
          %p1405 = pneg %p261
        $region62: #{tpu_custom_call.1} parent=55 // pred_check_branch
          %1407 = sbr.rel (%p1405) target = $region64
        $region63: #{tpu_custom_call.1} parent=55 // pred_region
          %s1408 = smul.u32 2, %s31
          %s1410 = ssub.s32 64, 64
          %1411 = vsyncadd %s1401, %s1410
          %s1412 = smul.addr %s30, 2
          %s1413 = sadd.s32 %s1408, %s1412
          %s1414 = smul.addr %s1413, 32
          %s1415 = scalar_lea.hbm %s9, %s1414
          %s1417 = sshll.u32 %s1404, 4
          %s1418 = int_to_ptr.vmem [resolvable:$true] %s1417
          %1420 = dma.vmem_to_hbm [thread:$0]  %s1418, 64, %s1415, %s1401
        $region64: #{tpu_custom_call.1} parent=55 // pred_fallthru
          _
      $region56: #{tpu_custom_call.1} parent=5 // pred_fallthru
        _
      %p1421 = scmp.le.s32.totalorder 2, %s21
      // Predicated region
      $region65: #{tpu_custom_call.1} parent=5 // pred_check
        %p1422 = pneg %p1421
      $region66: #{tpu_custom_call.1} parent=5 // pred_check_branch
        %1424 = sbr.rel (%p1422) target = $region68
      $region67: #{tpu_custom_call.1} parent=5 // pred_region
        %s1425 = ssub.s32 %s21, 2
        // Predicated region
        $region69: #{tpu_custom_call.1} parent=67 // pred_check
          %p1426 = pneg %p267
        $region70: #{tpu_custom_call.1} parent=67 // pred_check_branch
          %1428 = sbr.rel (%p1426) target = $region72
        $region71: #{tpu_custom_call.1} parent=67 // pred_region
          %s1429 = sand.u32 %s252, 1
          %s1430 = scalar_lea.sflag [#allocation4], %s1429
          %s1431 = sand.u32 %s252, 1
          %s1432 = smul.addr %s1431, 4
          %s1433 = scalar_lea.vmem [#allocation5], %s1432
          %1434 = dma.done %s1430, 64
        $region72: #{tpu_custom_call.1} parent=67 // pred_fallthru
          _
      $region68: #{tpu_custom_call.1} parent=5 // pred_fallthru
        _
    $region6: #{tpu_custom_call.1} parent=1 // loop_footer
      %s25 = sadd.s32 1, %s21
    $region7: #{tpu_custom_call.1} parent=1 // loop_footer_branch
      %20 = sbr.rel target = $region3
    $region8: #{tpu_custom_call.1} parent=1 // loop_exit
      _
    %1435 = vsyncpa [#allocation3], 1
    %s1436 = scalar_lea.sflag [#allocation3], 1
    %1437 = vsyncpa %s1436, 1
    %1438 = vsyncpa [#allocation4], 1
    %s1439 = scalar_lea.sflag [#allocation4], 1
    %1440 = vsyncpa %s1439, 1

</llo_original>
